<compile_context>
chip_gen: v5e
topology: v5e:2x2
jax: 0.10.0
libtpu: 0.0.40
codegen_flags: <defaults>
</compile_context>

<pallas_src>
import math
from functools import partial

import jax
import jax.numpy as jnp
from jax.experimental import pallas as pl
from jax.experimental.pallas import tpu as pltpu

NEG_INF = float("-inf")


# ---------------------------------------------------------------------------
# Kernel 1: QKV projection (scale already folded into Wq / bq).
# K is written transposed (C, TQ) so the attention kernel never transposes.
# ---------------------------------------------------------------------------
def _qkv_proj_kernel(x_ref, wq_ref, wk_ref, wv_ref, bq_ref, bk_ref, bv_ref,
                     q_ref, kt_ref, v_ref):
    x = x_ref[0]                                                   # (TQ, C)
    q = jnp.dot(x, wq_ref[...], preferred_element_type=jnp.float32) + bq_ref[...]
    q_ref[0] = q.astype(q_ref.dtype)
    k = jnp.dot(x, wk_ref[...], preferred_element_type=jnp.float32) + bk_ref[...]
    kt_ref[0] = k.T.astype(kt_ref.dtype)        # single transpose per block
    v = jnp.dot(x, wv_ref[...], preferred_element_type=jnp.float32) + bv_ref[...]
    v_ref[0] = v.astype(v_ref.dtype)


# ---------------------------------------------------------------------------
# Kernel 2: flash-style multi-head attention + fused output projection.
# Grid: (B, num_q_blocks, num_kv_blocks); kv axis is the reduction ("arbitrary").
# ---------------------------------------------------------------------------
def _flash_attn_kernel(q_ref, kt_ref, v_ref, wout_ref, bout_ref, o_ref,
                       m_ref, l_ref, acc_ref, *,
                       num_heads, head_dim, tk, seq_len, masked):
    kv_i = pl.program_id(2)

    @pl.when(kv_i == 0)
    def _():
        m_ref[...] = jnp.full_like(m_ref, NEG_INF)
        l_ref[...] = jnp.zeros_like(l_ref)
        acc_ref[...] = jnp.zeros_like(acc_ref)

    q = q_ref[0]            # (TQ, C)  -- Q pre-scaled by 1/sqrt(head_dim)
    kt = kt_ref[0]          # (C, TK)  -- pre-transposed K
    v = v_ref[0]            # (TK, C)

    if masked:
        # Only traced when the sequence was zero-padded: mask padded keys.
        col = jax.lax.broadcasted_iota(jnp.int32, (q.shape[0], kt.shape[1]), 1)
        kv_valid = (col + kv_i * tk) < seq_len                    # (TQ, TK)

    for h in range(num_heads):
        sl = slice(h * head_dim, (h + 1) * head_dim)
        # (TQ, D) @ (D, TK): contraction-major RHS -> no per-head transpose.
        s = jnp.dot(q[:, sl], kt[sl, :], preferred_element_type=jnp.float32)
        if masked:
            s = jnp.where(kv_valid, s, NEG_INF)

        m_prev = m_ref[h]                                          # (TQ, 1)
        m_new = jnp.maximum(m_prev, jnp.max(s, axis=-1, keepdims=True))
        alpha = jnp.exp(m_prev - m_new)                            # (TQ, 1)
        p = jnp.exp(s - m_new)                                     # (TQ, TK)

        l_ref[h] = alpha * l_ref[h] + jnp.sum(p, axis=-1, keepdims=True)
        acc_ref[:, sl] = alpha * acc_ref[:, sl] + jnp.dot(
            p, v[:, sl], preferred_element_type=jnp.float32)
        m_ref[h] = m_new

    @pl.when(kv_i == pl.num_programs(2) - 1)
    def _():
        # Normalize once per (b, q-block); tiny compared with the kv loop.
        for h in range(num_heads):
            sl = slice(h * head_dim, (h + 1) * head_dim)
            inv_l = pl.reciprocal(l_ref[h], approx=False)          # (TQ, 1)
            acc_ref[:, sl] = acc_ref[:, sl] * inv_l
        # Fused output projection on the normalized context.
        out = jnp.dot(acc_ref[...], wout_ref[...],
                      preferred_element_type=jnp.float32) + bout_ref[...]
        o_ref[0] = out.astype(o_ref.dtype)


# ---------------------------------------------------------------------------
# Tiling / VMEM helpers
# ---------------------------------------------------------------------------
def _vmem_capacity_bytes():
    try:
        return int(pltpu.get_tpu_info().vmem_capacity_bytes)
    except Exception:
        return 128 * 1024 * 1024                   # v5e/v6e default


def _largest_div_128(s_pad, cap):
    """Largest divisor of s_pad that is a multiple of 128 and <= cap."""
    d = (cap // 128) * 128
    while d > 128:
        if s_pad % d == 0:
            return d
        d -= 128
    return 128


def _tiling(seq_len, vmem_cap):
    """Return (padded seq len, tq, tk)."""
    if seq_len <= 512:
        # Full-extent blocks are always layout-legal; single step per axis.
        return seq_len, seq_len, seq_len
    s_pad = ((seq_len + 127) // 128) * 128         # pad; tail masked in-kernel
    # K/V HBM re-read traffic scales with n_q only -> keep tq large.
    # tk only sets the VMEM footprint -> shrink it first on small-VMEM parts.
    tk_cap = 256 if vmem_cap <= 96 * 1024 * 1024 else 512   # v7x: 64 MiB/TC
    tq = _largest_div_128(s_pad, 512)
    tk = _largest_div_128(s_pad, tk_cap)
    return s_pad, tq, tk


def _vmem_limit_bytes(tq, tk, chans, num_heads, vmem_cap):
    f32 = 4
    # QKV kernel: x/q/kT/v blocks double-buffered, Wq/Wk/Wv + biases
    # single-buffered, plus matmul / transpose temporaries.
    qkv = (2 * 4 * tq * chans + 3 * chans * chans + 3 * chans
           + 4 * tq * chans) * f32
    # Attention kernel: q/o + kT + v blocks double-buffered, out-proj weights
    # single-buffered, m/l scratch (lane-padded to 128) + acc scratch, and
    # (TQ, TK) score / prob / mask temporaries.
    attn = (2 * (2 * tq * chans + 2 * tk * chans) + chans * chans + chans
            + 2 * num_heads * tq * 128 + tq * chans
            + 3 * tq * tk) * f32
    est = max(qkv, attn)
    limit = max(32 * 1024 * 1024, (est * 3) // 2)
    return int(min(limit, (vmem_cap * 85) // 100))


def _const_spec(shape):
    """Constant-index block (weights / biases); single-buffered when supported."""
    idx = lambda *args: (0,) * len(shape)
    try:
        return pl.BlockSpec(shape, idx, pipeline_mode=pl.Buffered(1))
    except Exception:                               # older jax w/o pipeline_mode
        return pl.BlockSpec(shape, idx)


# ---------------------------------------------------------------------------
# Wrapper
# ---------------------------------------------------------------------------
def global_attention(x, params, num_heads):
    """Pallas implementation of GlobalAttention.forward (dropout=0.0)."""
    B, H, W, C = x.shape
    S = H * W
    assert C % num_heads == 0
    head_dim = C // num_heads

    vmem_cap = _vmem_capacity_bytes()
    s_pad, tq, tk = _tiling(S, vmem_cap)
    n_q = s_pad // tq
    n_kv = s_pad // tk
    vmem_limit = _vmem_limit_bytes(tq, tk, C, num_heads, vmem_cap)

    x_flat = x.reshape(B, S, C)
    if s_pad != S:
        x_flat = jnp.pad(x_flat, ((0, 0), (0, s_pad - S), (0, 0)))

    # Fold 1/sqrt(head_dim) into the Q projection (one-time constant xform).
    scale = 1.0 / math.sqrt(head_dim)
    w_in = params['in_proj_weight']                 # (3C, C), torch layout
    b_in = params['in_proj_bias']                   # (3C,)
    wq_t = (w_in[:C] * scale).T                     # (C, C)
    wk_t = w_in[C:2 * C].T
    wv_t = w_in[2 * C:].T
    bq = (b_in[:C] * scale).reshape(1, C)
    bk = b_in[C:2 * C].reshape(1, C)
    bv = b_in[2 * C:].reshape(1, C)
    w_out_t = params['out_proj_weight'].T           # (C, C)
    b_out = params['out_proj_bias'].reshape(1, C)

    # ---- 1) QKV projection (K emitted transposed) --------------------------
    row_spec = pl.BlockSpec((1, tq, C), lambda b, i: (b, i, 0))
    kt_out_spec = pl.BlockSpec((1, C, tq), lambda b, i: (b, 0, i))

    q, kt, v = pl.pallas_call(
        _qkv_proj_kernel,
        out_shape=(jax.ShapeDtypeStruct((B, s_pad, C), jnp.float32),
                   jax.ShapeDtypeStruct((B, C, s_pad), jnp.float32),
                   jax.ShapeDtypeStruct((B, s_pad, C), jnp.float32)),
        grid_spec=pltpu.PrefetchScalarGridSpec(
            num_scalar_prefetch=0,
            grid=(B, n_q),
            in_specs=[
                row_spec,
                _const_spec((C, C)), _const_spec((C, C)), _const_spec((C, C)),
                _const_spec((1, C)), _const_spec((1, C)), _const_spec((1, C)),
            ],
            out_specs=[row_spec, kt_out_spec, row_spec],
        ),
        compiler_params=pltpu.CompilerParams(
            dimension_semantics=("parallel", "parallel"),
            vmem_limit_bytes=vmem_limit),
    )(x_flat, wq_t, wk_t, wv_t, bq, bk, bv)

    # ---- 2) Flash attention + fused output projection ----------------------
    # NOTE (v7x): B * n_q >= 2 keeps both TensorCores busy; for B==1, n_q==1
    # shapes the grid degenerates to one parallel block (single-core).
    q_spec = pl.BlockSpec((1, tq, C), lambda b, qi, ki: (b, qi, 0))
    kt_spec = pl.BlockSpec((1, C, tk), lambda b, qi, ki: (b, 0, ki))
    v_spec = pl.BlockSpec((1, tk, C), lambda b, qi, ki: (b, ki, 0))

    out = pl.pallas_call(
        partial(_flash_attn_kernel, num_heads=num_heads, head_dim=head_dim,
                tk=tk, seq_len=S, masked=(s_pad != S)),
        out_shape=jax.ShapeDtypeStruct((B, s_pad, C), x.dtype),
        grid_spec=pltpu.PrefetchScalarGridSpec(
            num_scalar_prefetch=0,
            grid=(B, n_q, n_kv),
            in_specs=[
                q_spec, kt_spec, v_spec,
                _const_spec((C, C)), _const_spec((1, C)),
            ],
            out_specs=q_spec,
            scratch_shapes=[
                pltpu.VMEM((num_heads, tq, 1), jnp.float32),   # running max
                pltpu.VMEM((num_heads, tq, 1), jnp.float32),   # running sum
                pltpu.VMEM((tq, C), jnp.float32),              # context acc
            ],
        ),
        compiler_params=pltpu.CompilerParams(
            dimension_semantics=("parallel", "parallel", "arbitrary"),
            vmem_limit_bytes=vmem_limit),
    )(q, kt, v, w_out_t, b_out)

    if s_pad != S:
        out = out[:, :S]
    return out.reshape(B, H, W, C)


# ---------------------------------------------------------------------------
# Pure-JAX reference (matches torch.nn.MultiheadAttention with dropout=0)
# ---------------------------------------------------------------------------
def global_attention_ref(x, params, num_heads):
    B, H, W, C = x.shape
    S = H * W
    d = C // num_heads
    xf = x.reshape(B, S, C)
    qkv = xf @ params['in_proj_weight'].T + params['in_proj_bias']
    q, k, v = jnp.split(qkv, 3, axis=-1)

    def split_heads(t):
        return t.reshape(B, S, num_heads, d).transpose(0, 2, 1, 3)

    q, k, v = map(split_heads, (q, k, v))
    scores = (q @ jnp.swapaxes(k, -1, -2)) / jnp.sqrt(jnp.float32(d))
    p = jax.nn.softmax(scores, axis=-1)
    ctx = (p @ v).transpose(0, 2, 1, 3).reshape(B, S, C)
    out = ctx @ params['out_proj_weight'].T + params['out_proj_bias']
    return out.reshape(B, H, W, C)


def init_params(key, chans):
    """Deterministic synthetic parameters with nn.MultiheadAttention shapes."""
    k1, k2, k3, k4 = jax.random.split(key, 4)
    scale = 0.05
    return {
        'in_proj_weight': scale * jax.random.normal(k1, (3 * chans, chans), jnp.float32),
        'in_proj_bias': scale * jax.random.normal(k2, (3 * chans,), jnp.float32),
        'out_proj_weight': scale * jax.random.normal(k3, (chans, chans), jnp.float32),
        'out_proj_bias': scale * jax.random.normal(k4, (chans,), jnp.float32),
    }


if __name__ == "__main__":
    key = jax.random.PRNGKey(0)

    # Config A: tiny single-block path (S = 16, C = 32, 8 heads).
    B, Hh, Ww, C, num_heads = 2, 4, 4, 32, 8
    k1, k2, key = jax.random.split(key, 3)
    x = jax.random.normal(k1, (B, Hh, Ww, C), jnp.float32)
    params = init_params(k2, C)
    out = jax.block_until_ready(global_attention(x, params, num_heads))
    ref = global_attention_ref(x, params, num_heads)
    assert out.shape == x.shape
    assert jnp.allclose(out, ref, atol=1e-4, rtol=1e-4), "config A mismatch"

    # Config B: multi-block flash path with sequence padding + key masking
    # (S = 23*23 = 529 -> padded to 640, tq = tk = 128, 5x5 kv grid).
    B, Hh, Ww, C, num_heads = 1, 23, 23, 32, 4
    k1, k2, key = jax.random.split(key, 3)
    x = jax.random.normal(k1, (B, Hh, Ww, C), jnp.float32)
    params = init_params(k2, C)
    out = jax.block_until_ready(global_attention(x, params, num_heads))
    ref = global_attention_ref(x, params, num_heads)
    assert out.shape == x.shape
    assert jnp.allclose(out, ref, atol=1e-4, rtol=1e-4), "config B mismatch"

    print("KERNEL_OK")
</pallas_src>

<mosaic_0001>
module attributes {stable_mosaic.version = 11 : i64} {
  func.func @_qkv_proj_kernel(%arg0: i32, %arg1: i32, %arg2: memref<1x16x32xf32, #tpu.memory_space<vmem>>, %arg3: memref<32x32xf32, #tpu.memory_space<vmem>>, %arg4: memref<32x32xf32, #tpu.memory_space<vmem>>, %arg5: memref<32x32xf32, #tpu.memory_space<vmem>>, %arg6: memref<1x32xf32, #tpu.memory_space<vmem>>, %arg7: memref<1x32xf32, #tpu.memory_space<vmem>>, %arg8: memref<1x32xf32, #tpu.memory_space<vmem>>, %arg9: memref<1x16x32xf32, #tpu.memory_space<vmem>>, %arg10: memref<1x32x16xf32, #tpu.memory_space<vmem>>, %arg11: memref<1x16x32xf32, #tpu.memory_space<vmem>>) attributes {dimension_semantics = [#tpu.dimension_semantics<parallel>, #tpu.dimension_semantics<parallel>], iteration_bounds = array<i64: 2, 1>, scalar_prefetch = 0 : i64, scratch_operands = 0 : i64, tpu.core_type = #tpu.core_type<tc>, window_params = [{transform_indices = @transform_0, window_bounds = array<i64: 1, 16, 32>}, {pipeline_mode = #tpu.pipeline_mode<synchronous>, transform_indices = @transform_1, window_bounds = array<i64: 32, 32>}, {pipeline_mode = #tpu.pipeline_mode<synchronous>, transform_indices = @transform_2, window_bounds = array<i64: 32, 32>}, {pipeline_mode = #tpu.pipeline_mode<synchronous>, transform_indices = @transform_3, window_bounds = array<i64: 32, 32>}, {pipeline_mode = #tpu.pipeline_mode<synchronous>, transform_indices = @transform_4, window_bounds = array<i64: 1, 32>}, {pipeline_mode = #tpu.pipeline_mode<synchronous>, transform_indices = @transform_5, window_bounds = array<i64: 1, 32>}, {pipeline_mode = #tpu.pipeline_mode<synchronous>, transform_indices = @transform_6, window_bounds = array<i64: 1, 32>}, {transform_indices = @transform_7, window_bounds = array<i64: 1, 16, 32>}, {transform_indices = @transform_8, window_bounds = array<i64: 1, 32, 16>}, {transform_indices = @transform_9, window_bounds = array<i64: 1, 16, 32>}]} {
    %c0 = arith.constant 0 : index
    %c0_0 = arith.constant 0 : index
    %c0_1 = arith.constant 0 : index
    %0 = vector.load %arg2[%c0, %c0_0, %c0_1] : memref<1x16x32xf32, #tpu.memory_space<vmem>>, vector<1x16x32xf32>
    %1 = vector.shape_cast %0 : vector<1x16x32xf32> to vector<16x32xf32>
    %c0_2 = arith.constant 0 : index
    %c0_3 = arith.constant 0 : index
    %2 = vector.load %arg3[%c0_2, %c0_3] : memref<32x32xf32, #tpu.memory_space<vmem>>, vector<32x32xf32>
    %cst = arith.constant dense<0.000000e+00> : vector<16x32xf32>
    %3 = tpu.matmul %1, %2, %cst {dimension_numbers = #tpu.dot_dimension_numbers<[1], [0], [0], [1], [0, 0, 1, 1], [], []>} : vector<16x32xf32>, vector<32x32xf32>, vector<16x32xf32> -> vector<16x32xf32>
    %c0_4 = arith.constant 0 : index
    %c0_5 = arith.constant 0 : index
    %4 = vector.load %arg6[%c0_4, %c0_5] : memref<1x32xf32, #tpu.memory_space<vmem>>, vector<1x32xf32>
    %5 = vector.broadcast %4 : vector<1x32xf32> to vector<16x32xf32>
    %6 = arith.addf %3, %5 : vector<16x32xf32>
    %c0_6 = arith.constant 0 : index
    %c0_7 = arith.constant 0 : index
    %c0_8 = arith.constant 0 : index
    %7 = vector.load %arg9[%c0_6, %c0_7, %c0_8] : memref<1x16x32xf32, #tpu.memory_space<vmem>>, vector<1x16x32xf32>
    %8 = vector.shape_cast %7 : vector<1x16x32xf32> to vector<16x32xf32>
    %9 = vector.shape_cast %6 : vector<16x32xf32> to vector<1x16x32xf32>
    tpu.vector_store %arg9[%c0_6, %c0_7, %c0_8], %9 {strides = array<i32>} : memref<1x16x32xf32, #tpu.memory_space<vmem>>, vector<1x16x32xf32>,
    %c0_9 = arith.constant 0 : index
    %c0_10 = arith.constant 0 : index
    %10 = vector.load %arg4[%c0_9, %c0_10] : memref<32x32xf32, #tpu.memory_space<vmem>>, vector<32x32xf32>
    %cst_11 = arith.constant dense<0.000000e+00> : vector<16x32xf32>
    %11 = tpu.matmul %1, %10, %cst_11 {dimension_numbers = #tpu.dot_dimension_numbers<[1], [0], [0], [1], [0, 0, 1, 1], [], []>} : vector<16x32xf32>, vector<32x32xf32>, vector<16x32xf32> -> vector<16x32xf32>
    %c0_12 = arith.constant 0 : index
    %c0_13 = arith.constant 0 : index
    %12 = vector.load %arg7[%c0_12, %c0_13] : memref<1x32xf32, #tpu.memory_space<vmem>>, vector<1x32xf32>
    %13 = vector.broadcast %12 : vector<1x32xf32> to vector<16x32xf32>
    %14 = arith.addf %11, %13 : vector<16x32xf32>
    %15 = tpu.transpose %14, [1, 0] : vector<16x32xf32> -> vector<32x16xf32>
    %c0_14 = arith.constant 0 : index
    %c0_15 = arith.constant 0 : index
    %c0_16 = arith.constant 0 : index
    %16 = vector.load %arg10[%c0_14, %c0_15, %c0_16] : memref<1x32x16xf32, #tpu.memory_space<vmem>>, vector<1x32x16xf32>
    %17 = vector.shape_cast %16 : vector<1x32x16xf32> to vector<32x16xf32>
    %18 = vector.shape_cast %15 : vector<32x16xf32> to vector<1x32x16xf32>
    tpu.vector_store %arg10[%c0_14, %c0_15, %c0_16], %18 {strides = array<i32>} : memref<1x32x16xf32, #tpu.memory_space<vmem>>, vector<1x32x16xf32>,
    %c0_17 = arith.constant 0 : index
    %c0_18 = arith.constant 0 : index
    %19 = vector.load %arg5[%c0_17, %c0_18] : memref<32x32xf32, #tpu.memory_space<vmem>>, vector<32x32xf32>
    %cst_19 = arith.constant dense<0.000000e+00> : vector<16x32xf32>
    %20 = tpu.matmul %1, %19, %cst_19 {dimension_numbers = #tpu.dot_dimension_numbers<[1], [0], [0], [1], [0, 0, 1, 1], [], []>} : vector<16x32xf32>, vector<32x32xf32>, vector<16x32xf32> -> vector<16x32xf32>
    %c0_20 = arith.constant 0 : index
    %c0_21 = arith.constant 0 : index
    %21 = vector.load %arg8[%c0_20, %c0_21] : memref<1x32xf32, #tpu.memory_space<vmem>>, vector<1x32xf32>
    %22 = vector.broadcast %21 : vector<1x32xf32> to vector<16x32xf32>
    %23 = arith.addf %20, %22 : vector<16x32xf32>
    %c0_22 = arith.constant 0 : index
    %c0_23 = arith.constant 0 : index
    %c0_24 = arith.constant 0 : index
    %24 = vector.load %arg11[%c0_22, %c0_23, %c0_24] : memref<1x16x32xf32, #tpu.memory_space<vmem>>, vector<1x16x32xf32>
    %25 = vector.shape_cast %24 : vector<1x16x32xf32> to vector<16x32xf32>
    %26 = vector.shape_cast %23 : vector<16x32xf32> to vector<1x16x32xf32>
    tpu.vector_store %arg11[%c0_22, %c0_23, %c0_24], %26 {strides = array<i32>} : memref<1x16x32xf32, #tpu.memory_space<vmem>>, vector<1x16x32xf32>,
    return
  }
  func.func @transform_0(%arg0: i32, %arg1: i32) -> (i32, i32, i32) {
    %c0_i32 = arith.constant 0 : i32
    %c0_i32_0 = arith.constant 0 : i32
    return %arg0, %arg1, %c0_i32 : i32, i32, i32
  }
  func.func @transform_1(%arg0: i32, %arg1: i32) -> (i32, i32) {
    %c0_i32 = arith.constant 0 : i32
    %c0_i32_0 = arith.constant 0 : i32
    %c0_i32_1 = arith.constant 0 : i32
    return %c0_i32, %c0_i32_0 : i32, i32
  }
  func.func @transform_2(%arg0: i32, %arg1: i32) -> (i32, i32) {
    %c0_i32 = arith.constant 0 : i32
    %c0_i32_0 = arith.constant 0 : i32
    %c0_i32_1 = arith.constant 0 : i32
    return %c0_i32, %c0_i32_0 : i32, i32
  }
  func.func @transform_3(%arg0: i32, %arg1: i32) -> (i32, i32) {
    %c0_i32 = arith.constant 0 : i32
    %c0_i32_0 = arith.constant 0 : i32
    %c0_i32_1 = arith.constant 0 : i32
    return %c0_i32, %c0_i32_0 : i32, i32
  }
  func.func @transform_4(%arg0: i32, %arg1: i32) -> (i32, i32) {
    %c0_i32 = arith.constant 0 : i32
    %c0_i32_0 = arith.constant 0 : i32
    %c0_i32_1 = arith.constant 0 : i32
    return %c0_i32, %c0_i32_0 : i32, i32
  }
  func.func @transform_5(%arg0: i32, %arg1: i32) -> (i32, i32) {
    %c0_i32 = arith.constant 0 : i32
    %c0_i32_0 = arith.constant 0 : i32
    %c0_i32_1 = arith.constant 0 : i32
    return %c0_i32, %c0_i32_0 : i32, i32
  }
  func.func @transform_6(%arg0: i32, %arg1: i32) -> (i32, i32) {
    %c0_i32 = arith.constant 0 : i32
    %c0_i32_0 = arith.constant 0 : i32
    %c0_i32_1 = arith.constant 0 : i32
    return %c0_i32, %c0_i32_0 : i32, i32
  }
  func.func @transform_7(%arg0: i32, %arg1: i32) -> (i32, i32, i32) {
    %c0_i32 = arith.constant 0 : i32
    %c0_i32_0 = arith.constant 0 : i32
    return %arg0, %arg1, %c0_i32 : i32, i32, i32
  }
  func.func @transform_8(%arg0: i32, %arg1: i32) -> (i32, i32, i32) {
    %c0_i32 = arith.constant 0 : i32
    %c0_i32_0 = arith.constant 0 : i32
    return %arg0, %c0_i32, %arg1 : i32, i32, i32
  }
  func.func @transform_9(%arg0: i32, %arg1: i32) -> (i32, i32, i32) {
    %c0_i32 = arith.constant 0 : i32
    %c0_i32_0 = arith.constant 0 : i32
    return %arg0, %arg1, %c0_i32 : i32, i32, i32
  }
}

</mosaic_0001>

<llo_original>
// kernel: tpu_custom_call.1
$region0: #{tpu_custom_call.1}
  #allocation0 [shape = 'u32[]', space=smem, size = 0x4, offset = 0x4, fixed_abs, tag = 'smem constant byte address 0x4 - core index']
  #allocation1 [shape = 'u32[72,128]{1,0:T(1,128)}', space=vmem, size = 0x9000, scoped, tag = 'internal scratch']
  %s0 = inlined_call_operand.hbm [shape: f32[2,16,32], index: 0, kind: input, shape index: {}]
  %s1 = inlined_call_operand.hbm [shape: f32[32,32], index: 1, kind: input, shape index: {}]
  %s2 = inlined_call_operand.hbm [shape: f32[32,32], index: 2, kind: input, shape index: {}]
  %s3 = inlined_call_operand.hbm [shape: f32[32,32], index: 3, kind: input, shape index: {}]
  %s4 = inlined_call_operand.vmem [shape: f32[1,32], index: 4, kind: input, shape index: {}]
  %s5 = inlined_call_operand.vmem [shape: f32[1,32], index: 5, kind: input, shape index: {}]
  %s6 = inlined_call_operand.vmem [shape: f32[1,32], index: 6, kind: input, shape index: {}]
  %s7 = inlined_call_operand.hbm [shape: f32[2,16,32], index: 7, kind: output, shape index: {0}]
  %s8 = inlined_call_operand.vmem [shape: f32[2,32,16], index: 8, kind: output, shape index: {1}]
  %s9 = inlined_call_operand.hbm [shape: f32[2,16,32], index: 9, kind: output, shape index: {2}]
  %10 = xla_tuple %s7, %s8, %s9
  %s11 = sld [smem:[#allocation0]]
  $region93: #{tpu_custom_call.1} parent=0
    _
  %s13 = ssub.s32 1, %s11
  %s14 = scalar_select 0, %s13, %s11
  $region1: #{tpu_custom_call.1} parent=0
    #allocation2 [shape = 'u8[16384]{0}', space=vmem, size = 0x4000, scoped, tag = 'input window, operand 0']
    #allocation3 [shape = 's32[2]{0}', space=sflag, size = 0x8, scoped, tag = 'scoped memory for tpu_custom_call.1']
    #allocation4 [shape = 's32[2]{0}', space=sflag, size = 0x8, scoped, tag = 'scoped memory for tpu_custom_call.1']
    #allocation5 [shape = 'u8[16384]{0}', space=vmem, size = 0x4000, scoped, tag = 'input window, operand 1, single buffered']
    #allocation6 [shape = 's32[1]{0}', space=sflag, size = 0x4, scoped, tag = 'scoped memory for tpu_custom_call.1']
    #allocation7 [shape = 'u8[16384]{0}', space=vmem, size = 0x4000, scoped, tag = 'input window, operand 2, single buffered']
    #allocation8 [shape = 'u8[16384]{0}', space=vmem, size = 0x4000, scoped, tag = 'input window, operand 3, single buffered']
    #allocation9 [shape = 's32[1]{0}', space=sflag, size = 0x4, scoped, tag = 'scoped memory for tpu_custom_call.1']
    #allocation10 [shape = 'u8[16384]{0}', space=vmem, size = 0x4000, scoped, tag = 'output window, operand 0']
    #allocation11 [shape = 'u8[16384]{0}', space=vmem, size = 0x4000, scoped, tag = 'output window, operand 2']
    #allocation12 [shape = 's32[2]{0}', space=sflag, size = 0x8, scoped, tag = 'scoped memory for tpu_custom_call.1']
    %15 = vsyncpa [#allocation3], 0
    %s16 = scalar_lea.sflag [#allocation3], 1
    %17 = vsyncpa %s16, 0
    %18 = vsyncpa [#allocation6], 0
    %19 = vsyncpa [#allocation9], 0
    %20 = vsyncpa [#allocation4], 0
    %s21 = scalar_lea.sflag [#allocation4], 1
    %22 = vsyncpa %s21, 0
    %23 = vsyncpa [#allocation12], 0
    %s24 = scalar_lea.sflag [#allocation12], 1
    %25 = vsyncpa %s24, 0
    loop: start=0, step=1, limit=4
    $region2: #{tpu_custom_call.1} parent=1 // loop_pre_header
      _
    $region3: #{tpu_custom_call.1} parent=1 // loop_header
      %s27 = sphi 0, %s31
      %p28 = scmp.ge.s32.totalorder %s27, 4
      %s34 = sphi 0, %s46
      %s35 = sphi 0, %s42
      %s36 = sphi 0, %s34
      %s37 = sphi 0, %s35
      %s38 = sphi 0, %s36
      %s39 = sphi 0, %s37
      %s51 = sphi 0, %s53
      %s54 = sphi 0, %s51
      %s55 = sphi 0, %s54
      %s71 = sphi 0, %s55
      %s75 = sphi 0, %s75
      %s77 = sphi 0, %s75
      %s78 = sphi 0, %s77
      %s92 = sphi 0, %s78
      %s96 = sphi 0, %s96
      %s98 = sphi 0, %s96
      %s99 = sphi 0, %s98
      %s113 = sphi 0, %s99
      %s117 = sphi 0, %s117
      %s119 = sphi 0, %s117
      %s120 = sphi 0, %s119
      %s134 = sphi 0, %s120
      %s138 = sphi 0, %s138
      %s140 = sphi 0, %s138
      %s141 = sphi 0, %s140
      %s155 = sphi 0, %s141
      %s159 = sphi 0, %s159
      %s161 = sphi 0, %s159
      %s162 = sphi 0, %s161
      %s176 = sphi 0, %s162
      %s180 = sphi 0, %s180
      %s182 = sphi 0, %s180
      %s183 = sphi 0, %s182
      %s197 = sphi 0, %s183
      %s205 = sphi 0, %s207
      %s208 = sphi 0, %s205
      %s209 = sphi 0, %s208
      %s225 = sphi 0, %s209
      %s233 = sphi 0, %s235
      %s236 = sphi 0, %s233
      %s237 = sphi 0, %s236
      %s253 = sphi 0, %s237
      %s261 = sphi 0, %s263
      %s264 = sphi 0, %s261
      %s265 = sphi 0, %s264
      %s281 = sphi 0, %s265
    $region4: #{tpu_custom_call.1} parent=1 // loop_header_branch
      %30 = sbr.rel (%p28) target = $region8
    $region5: #{tpu_custom_call.1} parent=1 // loop_body
      %s32 = ssub.s32 %s27, 1
      %s33 = ssub.s32 %s27, 2
      %s40 = sadd.s32 1, %s35
      %p41 = scmp.ge.s32.totalorder %s40, 1
      %s42 = scalar_select %p41, 0, %s40
      %s43 = sadd.s32 1, %s34
      %s44 = scalar_select %p41, %s43, %s34
      %p45 = scmp.ge.s32.totalorder %s44, 2
      %s46 = scalar_select %p45, 0, %s44
      %s47 = ssub.s32 %s34, %s46
      %s48 = ssub.s32 %s35, %s42
      %s49 = sor.u32 %s47, %s48
      %p50 = scmp.eq.s32.totalorder %s49, 0
      %s52 = sadd.s32 %s51, 1
      %s53 = scalar_select %p50, %s51, %s52
      %p56 = pneg %p50
      %p57 = scmp.eq.s32.totalorder %s27, 1
      %p58 = por %p56, %p57
      %p59 = scmp.ne.s32.totalorder %s51, %s54
      %p60 = scmp.eq.s32.totalorder %s27, 0
      %p61 = por %p59, %p60
      %p62 = scmp.ne.s32.totalorder %s51, %s54
      %p63 = scmp.eq.s32.totalorder %s32, 1
      %p64 = por %p62, %p63
      %p65 = scmp.ne.s32.totalorder %s54, %s55
      %p66 = scmp.eq.s32.totalorder %s32, 0
      %p67 = por %p65, %p66
      %p68 = scmp.ne.s32.totalorder %s54, %s55
      %p69 = scmp.eq.s32.totalorder %s33, 1
      %p70 = por %p68, %p69
      %p72 = scmp.ne.s32.totalorder %s55, %s71
      %p73 = scmp.eq.s32.totalorder %s33, 0
      %p74 = por %p72, %p73
      %s76 = sadd.s32 %s75, 1
      %p79 = scmp.eq.s32.totalorder %s27, 1
      %p80 = scmp.ne.s32.totalorder %s75, %s77
      %p81 = scmp.eq.s32.totalorder %s27, 0
      %p82 = por %p80, %p81
      %p83 = scmp.ne.s32.totalorder %s75, %s77
      %p84 = scmp.eq.s32.totalorder %s32, 1
      %p85 = por %p83, %p84
      %p86 = scmp.ne.s32.totalorder %s77, %s78
      %p87 = scmp.eq.s32.totalorder %s32, 0
      %p88 = por %p86, %p87
      %p89 = scmp.ne.s32.totalorder %s77, %s78
      %p90 = scmp.eq.s32.totalorder %s33, 1
      %p91 = por %p89, %p90
      %p93 = scmp.ne.s32.totalorder %s78, %s92
      %p94 = scmp.eq.s32.totalorder %s33, 0
      %p95 = por %p93, %p94
      %s97 = sadd.s32 %s96, 1
      %p100 = scmp.eq.s32.totalorder %s27, 1
      %p101 = scmp.ne.s32.totalorder %s96, %s98
      %p102 = scmp.eq.s32.totalorder %s27, 0
      %p103 = por %p101, %p102
      %p104 = scmp.ne.s32.totalorder %s96, %s98
      %p105 = scmp.eq.s32.totalorder %s32, 1
      %p106 = por %p104, %p105
      %p107 = scmp.ne.s32.totalorder %s98, %s99
      %p108 = scmp.eq.s32.totalorder %s32, 0
      %p109 = por %p107, %p108
      %p110 = scmp.ne.s32.totalorder %s98, %s99
      %p111 = scmp.eq.s32.totalorder %s33, 1
      %p112 = por %p110, %p111
      %p114 = scmp.ne.s32.totalorder %s99, %s113
      %p115 = scmp.eq.s32.totalorder %s33, 0
      %p116 = por %p114, %p115
      %s118 = sadd.s32 %s117, 1
      %p121 = scmp.eq.s32.totalorder %s27, 1
      %p122 = scmp.ne.s32.totalorder %s117, %s119
      %p123 = scmp.eq.s32.totalorder %s27, 0
      %p124 = por %p122, %p123
      %p125 = scmp.ne.s32.totalorder %s117, %s119
      %p126 = scmp.eq.s32.totalorder %s32, 1
      %p127 = por %p125, %p126
      %p128 = scmp.ne.s32.totalorder %s119, %s120
      %p129 = scmp.eq.s32.totalorder %s32, 0
      %p130 = por %p128, %p129
      %p131 = scmp.ne.s32.totalorder %s119, %s120
      %p132 = scmp.eq.s32.totalorder %s33, 1
      %p133 = por %p131, %p132
      %p135 = scmp.ne.s32.totalorder %s120, %s134
      %p136 = scmp.eq.s32.totalorder %s33, 0
      %p137 = por %p135, %p136
      %s139 = sadd.s32 %s138, 1
      %p142 = scmp.eq.s32.totalorder %s27, 1
      %p143 = scmp.ne.s32.totalorder %s138, %s140
      %p144 = scmp.eq.s32.totalorder %s27, 0
      %p145 = por %p143, %p144
      %p146 = scmp.ne.s32.totalorder %s138, %s140
      %p147 = scmp.eq.s32.totalorder %s32, 1
      %p148 = por %p146, %p147
      %p149 = scmp.ne.s32.totalorder %s140, %s141
      %p150 = scmp.eq.s32.totalorder %s32, 0
      %p151 = por %p149, %p150
      %p152 = scmp.ne.s32.totalorder %s140, %s141
      %p153 = scmp.eq.s32.totalorder %s33, 1
      %p154 = por %p152, %p153
      %p156 = scmp.ne.s32.totalorder %s141, %s155
      %p157 = scmp.eq.s32.totalorder %s33, 0
      %p158 = por %p156, %p157
      %s160 = sadd.s32 %s159, 1
      %p163 = scmp.eq.s32.totalorder %s27, 1
      %p164 = scmp.ne.s32.totalorder %s159, %s161
      %p165 = scmp.eq.s32.totalorder %s27, 0
      %p166 = por %p164, %p165
      %p167 = scmp.ne.s32.totalorder %s159, %s161
      %p168 = scmp.eq.s32.totalorder %s32, 1
      %p169 = por %p167, %p168
      %p170 = scmp.ne.s32.totalorder %s161, %s162
      %p171 = scmp.eq.s32.totalorder %s32, 0
      %p172 = por %p170, %p171
      %p173 = scmp.ne.s32.totalorder %s161, %s162
      %p174 = scmp.eq.s32.totalorder %s33, 1
      %p175 = por %p173, %p174
      %p177 = scmp.ne.s32.totalorder %s162, %s176
      %p178 = scmp.eq.s32.totalorder %s33, 0
      %p179 = por %p177, %p178
      %s181 = sadd.s32 %s180, 1
      %p184 = scmp.eq.s32.totalorder %s27, 1
      %p185 = scmp.ne.s32.totalorder %s180, %s182
      %p186 = scmp.eq.s32.totalorder %s27, 0
      %p187 = por %p185, %p186
      %p188 = scmp.ne.s32.totalorder %s180, %s182
      %p189 = scmp.eq.s32.totalorder %s32, 1
      %p190 = por %p188, %p189
      %p191 = scmp.ne.s32.totalorder %s182, %s183
      %p192 = scmp.eq.s32.totalorder %s32, 0
      %p193 = por %p191, %p192
      %p194 = scmp.ne.s32.totalorder %s182, %s183
      %p195 = scmp.eq.s32.totalorder %s33, 1
      %p196 = por %p194, %p195
      %p198 = scmp.ne.s32.totalorder %s183, %s197
      %p199 = scmp.eq.s32.totalorder %s33, 0
      %p200 = por %p198, %p199
      %s201 = ssub.s32 %s34, %s46
      %s202 = ssub.s32 %s35, %s42
      %s203 = sor.u32 %s201, %s202
      %p204 = scmp.eq.s32.totalorder %s203, 0
      %s206 = sadd.s32 %s205, 1
      %s207 = scalar_select %p204, %s205, %s206
      %p210 = pneg %p204
      %p211 = scmp.eq.s32.totalorder %s27, 1
      %p212 = por %p210, %p211
      %p213 = scmp.ne.s32.totalorder %s205, %s208
      %p214 = scmp.eq.s32.totalorder %s27, 0
      %p215 = por %p213, %p214
      %p216 = scmp.ne.s32.totalorder %s205, %s208
      %p217 = scmp.eq.s32.totalorder %s32, 1
      %p218 = por %p216, %p217
      %p219 = scmp.ne.s32.totalorder %s208, %s209
      %p220 = scmp.eq.s32.totalorder %s32, 0
      %p221 = por %p219, %p220
      %p222 = scmp.ne.s32.totalorder %s208, %s209
      %p223 = scmp.eq.s32.totalorder %s33, 1
      %p224 = por %p222, %p223
      %p226 = scmp.ne.s32.totalorder %s209, %s225
      %p227 = scmp.eq.s32.totalorder %s33, 0
      %p228 = por %p226, %p227
      %s229 = ssub.s32 %s34, %s46
      %s230 = ssub.s32 %s35, %s42
      %s231 = sor.u32 %s229, %s230
      %p232 = scmp.eq.s32.totalorder %s231, 0
      %s234 = sadd.s32 %s233, 1
      %s235 = scalar_select %p232, %s233, %s234
      %p238 = pneg %p232
      %p239 = scmp.eq.s32.totalorder %s27, 1
      %p240 = por %p238, %p239
      %p241 = scmp.ne.s32.totalorder %s233, %s236
      %p242 = scmp.eq.s32.totalorder %s27, 0
      %p243 = por %p241, %p242
      %p244 = scmp.ne.s32.totalorder %s233, %s236
      %p245 = scmp.eq.s32.totalorder %s32, 1
      %p246 = por %p244, %p245
      %p247 = scmp.ne.s32.totalorder %s236, %s237
      %p248 = scmp.eq.s32.totalorder %s32, 0
      %p249 = por %p247, %p248
      %p250 = scmp.ne.s32.totalorder %s236, %s237
      %p251 = scmp.eq.s32.totalorder %s33, 1
      %p252 = por %p250, %p251
      %p254 = scmp.ne.s32.totalorder %s237, %s253
      %p255 = scmp.eq.s32.totalorder %s33, 0
      %p256 = por %p254, %p255
      %s257 = ssub.s32 %s34, %s46
      %s258 = ssub.s32 %s35, %s42
      %s259 = sor.u32 %s257, %s258
      %p260 = scmp.eq.s32.totalorder %s259, 0
      %s262 = sadd.s32 %s261, 1
      %s263 = scalar_select %p260, %s261, %s262
      %p266 = pneg %p260
      %p267 = scmp.eq.s32.totalorder %s27, 1
      %p268 = por %p266, %p267
      %p269 = scmp.ne.s32.totalorder %s261, %s264
      %p270 = scmp.eq.s32.totalorder %s27, 0
      %p271 = por %p269, %p270
      %p272 = scmp.ne.s32.totalorder %s261, %s264
      %p273 = scmp.eq.s32.totalorder %s32, 1
      %p274 = por %p272, %p273
      %p275 = scmp.ne.s32.totalorder %s264, %s265
      %p276 = scmp.eq.s32.totalorder %s32, 0
      %p277 = por %p275, %p276
      %p278 = scmp.ne.s32.totalorder %s264, %s265
      %p279 = scmp.eq.s32.totalorder %s33, 1
      %p280 = por %p278, %p279
      %p282 = scmp.ne.s32.totalorder %s265, %s281
      %p283 = scmp.eq.s32.totalorder %s33, 0
      %p284 = por %p282, %p283
      %p285 = scmp.le.s32.totalorder 1, %s27
      %p286 = scmp.lt.s32.totalorder %s27, 3
      %p287 = pnand %p285, %p286
      %p288 = pneg %p287
      // Predicated region
      $region9: #{tpu_custom_call.1} parent=5 // pred_check
        _
      $region10: #{tpu_custom_call.1} parent=5 // pred_check_branch
        %290 = sbr.rel (%p287) target = $region12
      $region11: #{tpu_custom_call.1} parent=5 // pred_region
        %s291 = ssub.s32 %s27, 1
        // Predicated region
        $region13: #{tpu_custom_call.1} parent=11 // pred_check
          %p292 = pneg %p88
        $region14: #{tpu_custom_call.1} parent=11 // pred_check_branch
          %294 = sbr.rel (%p292) target = $region16
        $region15: #{tpu_custom_call.1} parent=11 // pred_region
          %296 = vsyncadd [#allocation6], 0
          %s297 = sshll.u32 %s1, 4
          %s298 = int_to_ptr.hbm [resolvable:$true] %s297
          %s299 = sshll.u32 [#allocation5], 4
          %s300 = int_to_ptr.vmem [resolvable:$true] %s299
          %305 = dma.hbm_to_vmem [thread:$0]  %s298, 512, %s300, [#allocation6], 128, 128, 8
        $region16: #{tpu_custom_call.1} parent=11 // pred_fallthru
          _
        // Predicated region
        $region17: #{tpu_custom_call.1} parent=11 // pred_check
          %p306 = pneg %p109
        $region18: #{tpu_custom_call.1} parent=11 // pred_check_branch
          %308 = sbr.rel (%p306) target = $region20
        $region19: #{tpu_custom_call.1} parent=11 // pred_region
          %310 = vsyncadd [#allocation6], 0
          %s311 = sshll.u32 %s2, 4
          %s312 = int_to_ptr.hbm [resolvable:$true] %s311
          %s313 = sshll.u32 [#allocation7], 4
          %s314 = int_to_ptr.vmem [resolvable:$true] %s313
          %319 = dma.hbm_to_vmem [thread:$0]  %s312, 512, %s314, [#allocation6], 128, 128, 8
        $region20: #{tpu_custom_call.1} parent=11 // pred_fallthru
          _
        // Predicated region
        $region21: #{tpu_custom_call.1} parent=11 // pred_check
          %p320 = pneg %p130
        $region22: #{tpu_custom_call.1} parent=11 // pred_check_branch
          %322 = sbr.rel (%p320) target = $region24
        $region23: #{tpu_custom_call.1} parent=11 // pred_region
          %324 = vsyncadd [#allocation9], 0
          %s325 = sshll.u32 %s3, 4
          %s326 = int_to_ptr.hbm [resolvable:$true] %s325
          %s327 = sshll.u32 [#allocation8], 4
          %s328 = int_to_ptr.vmem [resolvable:$true] %s327
          %333 = dma.hbm_to_vmem [thread:$0]  %s326, 512, %s328, [#allocation9], 128, 128, 8
        $region24: #{tpu_custom_call.1} parent=11 // pred_fallthru
          _
        // Predicated region
        $region25: #{tpu_custom_call.1} parent=11 // pred_check
          %p334 = pneg %p151
        $region26: #{tpu_custom_call.1} parent=11 // pred_check_branch
          %336 = sbr.rel (%p334) target = $region28
        $region27: #{tpu_custom_call.1} parent=11 // pred_region
          _
        $region28: #{tpu_custom_call.1} parent=11 // pred_fallthru
          _
        // Predicated region
        $region29: #{tpu_custom_call.1} parent=11 // pred_check
          %p337 = pneg %p172
        $region30: #{tpu_custom_call.1} parent=11 // pred_check_branch
          %339 = sbr.rel (%p337) target = $region32
        $region31: #{tpu_custom_call.1} parent=11 // pred_region
          _
        $region32: #{tpu_custom_call.1} parent=11 // pred_fallthru
          _
        // Predicated region
        $region33: #{tpu_custom_call.1} parent=11 // pred_check
          %p340 = pneg %p193
        $region34: #{tpu_custom_call.1} parent=11 // pred_check_branch
          %342 = sbr.rel (%p340) target = $region36
        $region35: #{tpu_custom_call.1} parent=11 // pred_region
          _
        $region36: #{tpu_custom_call.1} parent=11 // pred_fallthru
          _
      $region12: #{tpu_custom_call.1} parent=5 // pred_fallthru
        _
      %p343 = scmp.lt.s32.totalorder %s27, 2
      // Predicated region
      $region37: #{tpu_custom_call.1} parent=5 // pred_check
        %p344 = pneg %p343
      $region38: #{tpu_custom_call.1} parent=5 // pred_check_branch
        %346 = sbr.rel (%p344) target = $region40
      $region39: #{tpu_custom_call.1} parent=5 // pred_region
        // Predicated region
        $region41: #{tpu_custom_call.1} parent=39 // pred_check
          %p347 = pneg %p61
        $region42: #{tpu_custom_call.1} parent=39 // pred_check_branch
          %349 = sbr.rel (%p347) target = $region44
        $region43: #{tpu_custom_call.1} parent=39 // pred_region
          %s350 = sand.u32 %s51, 1
          %s351 = scalar_lea.sflag [#allocation3], %s350
          %s352 = sand.u32 %s51, 1
          %s353 = smul.addr %s352, 16
          %s354 = scalar_lea.vmem [#allocation2], %s353
          %s355 = smul.u32 2, %s35
          %357 = vsyncadd %s351, 0
          %s358 = smul.addr %s34, 2
          %s359 = sadd.s32 %s355, %s358
          %s360 = smul.addr %s359, 8
          %s361 = scalar_lea.hbm %s0, %s360
          %s362 = sshll.u32 %s361, 4
          %s363 = int_to_ptr.hbm [resolvable:$true] %s362
          %s364 = sshll.u32 %s354, 4
          %s365 = int_to_ptr.vmem [resolvable:$true] %s364
          %370 = dma.hbm_to_vmem [thread:$0]  %s363, 256, %s365, %s351, 128, 128, 8
        $region44: #{tpu_custom_call.1} parent=39 // pred_fallthru
          _
      $region40: #{tpu_custom_call.1} parent=5 // pred_fallthru
        _
      %p371 = scmp.le.s32.totalorder 1, %s27
      %p372 = scmp.lt.s32.totalorder %s27, 3
      %p373 = pnand %p371, %p372
      %p374 = pneg %p373
      // Predicated region
      $region45: #{tpu_custom_call.1} parent=5 // pred_check
        _
      $region46: #{tpu_custom_call.1} parent=5 // pred_check_branch
        %376 = sbr.rel (%p373) target = $region48
      $region47: #{tpu_custom_call.1} parent=5 // pred_region
        %s377 = ssub.s32 %s27, 1
        %s378 = sand.u32 %s54, 1
        %s379 = scalar_lea.sflag [#allocation3], %s378
        %s380 = sand.u32 %s54, 1
        %s381 = smul.addr %s380, 16
        %s382 = scalar_lea.vmem [#allocation2], %s381
        // Predicated region
        $region49: #{tpu_custom_call.1} parent=47 // pred_check
          %p383 = pneg %p67
        $region50: #{tpu_custom_call.1} parent=47 // pred_check_branch
          %385 = sbr.rel (%p383) target = $region52
        $region51: #{tpu_custom_call.1} parent=47 // pred_region
          %387 = dma.done %s379, 256
        $region52: #{tpu_custom_call.1} parent=47 // pred_fallthru
          _
        // Predicated region
        $region53: #{tpu_custom_call.1} parent=47 // pred_check
          %p388 = pneg %p88
        $region54: #{tpu_custom_call.1} parent=47 // pred_check_branch
          %390 = sbr.rel (%p388) target = $region56
        $region55: #{tpu_custom_call.1} parent=47 // pred_region
          %392 = dma.done [#allocation6], 512
        $region56: #{tpu_custom_call.1} parent=47 // pred_fallthru
          _
        // Predicated region
        $region57: #{tpu_custom_call.1} parent=47 // pred_check
          %p393 = pneg %p109
        $region58: #{tpu_custom_call.1} parent=47 // pred_check_branch
          %395 = sbr.rel (%p393) target = $region60
        $region59: #{tpu_custom_call.1} parent=47 // pred_region
          %397 = dma.done [#allocation6], 512
        $region60: #{tpu_custom_call.1} parent=47 // pred_fallthru
          _
        // Predicated region
        $region61: #{tpu_custom_call.1} parent=47 // pred_check
          %p398 = pneg %p130
        $region62: #{tpu_custom_call.1} parent=47 // pred_check_branch
          %400 = sbr.rel (%p398) target = $region64
        $region63: #{tpu_custom_call.1} parent=47 // pred_region
          %402 = dma.done [#allocation9], 512
        $region64: #{tpu_custom_call.1} parent=47 // pred_fallthru
          _
        %s403 = sand.u32 %s54, 1
        %s404 = scalar_lea.sflag [#allocation3], %s403
        %s405 = sand.u32 %s54, 1
        %s406 = smul.addr %s405, 16
        %s407 = scalar_lea.vmem [#allocation2], %s406
        %p408 = pneg %p67
        %p409 = pneg %p64
        %p410 = pneg %p88
        %p411 = pneg %p85
        %p412 = pneg %p109
        %p413 = pneg %p106
        %p414 = pneg %p130
        %p415 = pneg %p127
        %p416 = pneg %p151
        %p417 = pneg %p148
        %p418 = pneg %p172
        %p419 = pneg %p169
        %p420 = pneg %p193
        %p421 = pneg %p190
        %p422 = pneg %p221
        %p423 = pneg %p218
        %s424 = sand.u32 %s208, 1
        %s425 = scalar_lea.sflag [#allocation4], %s424
        %s426 = sand.u32 %s208, 1
        %s427 = smul.addr %s426, 16
        %s428 = scalar_lea.vmem [#allocation10], %s427
        %p429 = pneg %p249
        %p430 = pneg %p246
        %p431 = scmp.lt.s32.totalorder %s36, 1
        %s432 = scalar_select %p431, %s36, 1
        %p433 = scmp.lt.s32.totalorder %s37, 0
        %s434 = scalar_select %p433, %s37, 0
        %s435 = smul.addr %s432, 4
        %s436 = sadd.s32 %s434, %s435
        %s437 = smul.addr %s436, 8
        %s438 = scalar_lea.vmem %s8, %s437
        %p439 = pneg %p277
        %p440 = pneg %p274
        %s441 = sand.u32 %s264, 1
        %s442 = scalar_lea.sflag [#allocation12], %s441
        %s443 = sand.u32 %s264, 1
        %s444 = smul.addr %s443, 16
        %s445 = scalar_lea.vmem [#allocation11], %s444
        %s446 = smul.u32 2, %s37
        %s447 = smul.u32 2, %s37
        %p448 = scmp.lt.s32.totalorder %s36, 1
        %s449 = scalar_select %p448, %s36, 1
        %p450 = scmp.lt.s32.totalorder %s37, 0
        %s451 = scalar_select %p450, %s37, 0
        %s452 = smul.addr %s449, 4
        %s453 = sadd.s32 %s451, %s452
        %s454 = smul.addr %s453, 8
        %s455 = scalar_lea.vmem %s8, %s454
        %s456 = smul.u32 2, %s37
        %v457 = vld [vmem:[%s382] sm:$0xff]
        %v458 = vld [vmem:[%s382 + $0x8] sm:$0xff]
        %v459 = vld [vmem:[#allocation5] sm:$0xff]
        %v460 = vld [vmem:[#allocation5 + $0x8] sm:$0xff]
        %v461 = vld [vmem:[#allocation5 + $0x10] sm:$0xff]
        %v462 = vld [vmem:[#allocation5 + $0x18] sm:$0xff]
        %v463 = vld [vmem:[%s4] sm:$0x1]
        %v465 = vperm.slane %v463, 0
        %vm467 = vcmask 261120
        %v469 = vsel %vm467, %v457, 0
        %v472 = vsel %vm467, %v458, 0
        %474 = vmatpush.msra.mxu0 0.0
        %475 = vmatpush.msra.mxu0 0.0
        %476 = vmatpush.msra.mxu0 0.0
        %477 = vmatpush.msra.mxu0 0.0
        %478 = vmatpush.msra.mxu0 0.0
        %479 = vmatpush.msra.mxu0 0.0
        %480 = vmatpush.msra.mxu0 0.0
        %481 = vmatpush.msra.mxu0 0.0
        %482 = vmatpush.msra.mxu0 0.0
        %483 = vmatpush.msra.mxu0 0.0
        %484 = vmatpush.msra.mxu0 0.0
        %485 = vmatpush.msra.mxu0 0.0
        %486 = vmatpush.msra.mxu0 %v462
        %487 = vmatpush.msra.mxu0 %v461
        %488 = vmatpush.msra.mxu0 %v460
        %489 = vmatpush.msra.mxu0 %v459
        %490 = vmatmul.f32.gmra.mxu0 %v469
        %v491 = vpop.f32.mrf.mxu0
        %v492 = vadd.f32 %v465, %v491
        %493 = vmatmul.f32.gmra.mxu0 %v472
        %v494 = vpop.f32.mrf.mxu0
        %v495 = vadd.f32 %v465, %v494
        %496 = vdwg.mxu0
        %497 = vst.msk [vmem:[%s428] sm:$0xff] %vm467, %v492
        %498 = vst.msk [vmem:[%s428 + $0x8] sm:$0xff] %vm467, %v495
        %v499 = vld [vmem:[#allocation7] sm:$0xff]
        %v500 = vld [vmem:[#allocation7 + $0x8] sm:$0xff]
        %v501 = vld [vmem:[#allocation7 + $0x10] sm:$0xff]
        %v502 = vld [vmem:[#allocation7 + $0x18] sm:$0xff]
        %v503 = vld [vmem:[%s5] sm:$0x1]
        %v505 = vperm.slane %v503, 0
        %507 = vmatpush.msra.mxu0 0.0
        %508 = vmatpush.msra.mxu0 0.0
        %509 = vmatpush.msra.mxu0 0.0
        %510 = vmatpush.msra.mxu0 0.0
        %511 = vmatpush.msra.mxu0 0.0
        %512 = vmatpush.msra.mxu0 0.0
        %513 = vmatpush.msra.mxu0 0.0
        %514 = vmatpush.msra.mxu0 0.0
        %515 = vmatpush.msra.mxu0 0.0
        %516 = vmatpush.msra.mxu0 0.0
        %517 = vmatpush.msra.mxu0 0.0
        %518 = vmatpush.msra.mxu0 0.0
        %519 = vmatpush.msra.mxu0 %v502
        %520 = vmatpush.msra.mxu0 %v501
        %521 = vmatpush.msra.mxu0 %v500
        %522 = vmatpush.msra.mxu0 %v499
        %523 = vmatmul.f32.gmra.mxu0 %v469
        %v524 = vpop.f32.mrf.mxu0
        %v525 = vadd.f32 %v505, %v524
        %526 = vmatmul.f32.gmra.mxu0 %v472
        %v527 = vpop.f32.mrf.mxu0
        %v528 = vadd.f32 %v505, %v527
        %529 = vdwg.mxu0
        %530 = vxpose.xlu0.b32.start [1/16] %v525, 128
        %531 = vxpose.xlu0.b32.cont [2/16] %v528, 128
        %532 = vxpose.xlu0.b32.cont [3/16] 0.0, 128
        %533 = vxpose.xlu0.b32.cont [4/16] 0.0, 128
        %534 = vxpose.xlu0.b32.cont [5/16] 0.0, 128
        %535 = vxpose.xlu0.b32.cont [6/16] 0.0, 128
        %536 = vxpose.xlu0.b32.cont [7/16] 0.0, 128
        %537 = vxpose.xlu0.b32.cont [8/16] 0.0, 128
        %538 = vxpose.xlu0.b32.cont [9/16] 0.0, 128
        %539 = vxpose.xlu0.b32.cont [10/16] 0.0, 128
        %540 = vxpose.xlu0.b32.cont [11/16] 0.0, 128
        %541 = vxpose.xlu0.b32.cont [12/16] 0.0, 128
        %542 = vxpose.xlu0.b32.cont [13/16] 0.0, 128
        %543 = vxpose.xlu0.b32.cont [14/16] 0.0, 128
        %544 = vxpose.xlu0.b32.cont [15/16] 0.0, 128
        %545 = vxpose.xlu0.b32.end [16/16] 0.0, 128
        %v546 = vpop.trf.xlu0
        %v547 = vpop.trf.xlu0
        %v548 = vpop.trf.xlu0
        %v549 = vpop.trf.xlu0
        %v550 = vpop.trf.xlu0
        %v551 = vpop.trf.xlu0
        %v552 = vpop.trf.xlu0
        %v553 = vpop.trf.xlu0
        %v554 = vpop.trf.xlu0
        %v555 = vpop.trf.xlu0
        %v556 = vpop.trf.xlu0
        %v557 = vpop.trf.xlu0
        %v558 = vpop.trf.xlu0
        %v559 = vpop.trf.xlu0
        %v560 = vpop.trf.xlu0
        %v561 = vpop.trf.xlu0
        %vm562 = vcmask 130048
        %563 = vst.msk [vmem:[%s455] sm:$0xff] %vm562, %v546
        %564 = vst.msk [vmem:[%s455 + $0x8] sm:$0xff] %vm562, %v547
        %565 = vst.msk [vmem:[%s455 + $0x10] sm:$0xff] %vm562, %v548
        %566 = vst.msk [vmem:[%s455 + $0x18] sm:$0xff] %vm562, %v549
        %v567 = vld [vmem:[#allocation8] sm:$0xff]
        %v568 = vld [vmem:[#allocation8 + $0x8] sm:$0xff]
        %v569 = vld [vmem:[#allocation8 + $0x10] sm:$0xff]
        %v570 = vld [vmem:[#allocation8 + $0x18] sm:$0xff]
        %v571 = vld [vmem:[%s6] sm:$0x1]
        %v573 = vperm.slane %v571, 0
        %575 = vmatpush.msra.mxu0 0.0
        %576 = vmatpush.msra.mxu0 0.0
        %577 = vmatpush.msra.mxu0 0.0
        %578 = vmatpush.msra.mxu0 0.0
        %579 = vmatpush.msra.mxu0 0.0
        %580 = vmatpush.msra.mxu0 0.0
        %581 = vmatpush.msra.mxu0 0.0
        %582 = vmatpush.msra.mxu0 0.0
        %583 = vmatpush.msra.mxu0 0.0
        %584 = vmatpush.msra.mxu0 0.0
        %585 = vmatpush.msra.mxu0 0.0
        %586 = vmatpush.msra.mxu0 0.0
        %587 = vmatpush.msra.mxu0 %v570
        %588 = vmatpush.msra.mxu0 %v569
        %589 = vmatpush.msra.mxu0 %v568
        %590 = vmatpush.msra.mxu0 %v567
        %591 = vmatmul.f32.gmra.mxu0 %v469
        %v592 = vpop.f32.mrf.mxu0
        %v593 = vadd.f32 %v573, %v592
        %594 = vmatmul.f32.gmra.mxu0 %v472
        %v595 = vpop.f32.mrf.mxu0
        %v596 = vadd.f32 %v573, %v595
        %597 = vdwg.mxu0
        %598 = vst.msk [vmem:[%s445] sm:$0xff] %vm467, %v593
        %599 = vst.msk [vmem:[%s445 + $0x8] sm:$0xff] %vm467, %v596
        %s600 = sand.u32 %s208, 1
        %s601 = scalar_lea.sflag [#allocation4], %s600
        %s602 = sand.u32 %s208, 1
        %s603 = smul.addr %s602, 16
        %s604 = scalar_lea.vmem [#allocation10], %s603
        %p605 = scmp.lt.s32.totalorder %s36, 1
        %s606 = scalar_select %p605, %s36, 1
        %p607 = scmp.lt.s32.totalorder %s37, 0
        %s608 = scalar_select %p607, %s37, 0
        %s609 = smul.addr %s606, 4
        %s610 = sadd.s32 %s608, %s609
        %s611 = smul.addr %s610, 8
        %s612 = scalar_lea.vmem %s8, %s611
        %s613 = sand.u32 %s264, 1
        %s614 = scalar_lea.sflag [#allocation12], %s613
        %s615 = sand.u32 %s264, 1
        %s616 = smul.addr %s615, 16
        %s617 = scalar_lea.vmem [#allocation11], %s616
        // Predicated region
        $region65: #{tpu_custom_call.1} parent=47 // pred_check
          %p618 = pneg %p218
        $region66: #{tpu_custom_call.1} parent=47 // pred_check_branch
          %620 = sbr.rel (%p618) target = $region68
        $region67: #{tpu_custom_call.1} parent=47 // pred_region
          %s621 = smul.u32 2, %s37
          %623 = vsyncadd %s601, 0
          %s624 = smul.addr %s36, 2
          %s625 = sadd.s32 %s621, %s624
          %s626 = smul.addr %s625, 8
          %s627 = scalar_lea.hbm %s7, %s626
          %s628 = sshll.u32 %s604, 4
          %s629 = int_to_ptr.vmem [resolvable:$true] %s628
          %s630 = sshll.u32 %s627, 4
          %s631 = int_to_ptr.hbm [resolvable:$true] %s630
          %636 = dma.vmem_to_hbm [thread:$0]  %s629, 256, %s631, %s601, 128, 128, 8
        $region68: #{tpu_custom_call.1} parent=47 // pred_fallthru
          _
        // Predicated region
        $region69: #{tpu_custom_call.1} parent=47 // pred_check
          %p637 = pneg %p246
        $region70: #{tpu_custom_call.1} parent=47 // pred_check_branch
          %639 = sbr.rel (%p637) target = $region72
        $region71: #{tpu_custom_call.1} parent=47 // pred_region
          _
        $region72: #{tpu_custom_call.1} parent=47 // pred_fallthru
          _
        // Predicated region
        $region73: #{tpu_custom_call.1} parent=47 // pred_check
          %p640 = pneg %p274
        $region74: #{tpu_custom_call.1} parent=47 // pred_check_branch
          %642 = sbr.rel (%p640) target = $region76
        $region75: #{tpu_custom_call.1} parent=47 // pred_region
          %s643 = smul.u32 2, %s37
          %645 = vsyncadd %s614, 0
          %s646 = smul.addr %s36, 2
          %s647 = sadd.s32 %s643, %s646
          %s648 = smul.addr %s647, 8
          %s649 = scalar_lea.hbm %s9, %s648
          %s650 = sshll.u32 %s617, 4
          %s651 = int_to_ptr.vmem [resolvable:$true] %s650
          %s652 = sshll.u32 %s649, 4
          %s653 = int_to_ptr.hbm [resolvable:$true] %s652
          %658 = dma.vmem_to_hbm [thread:$0]  %s651, 256, %s653, %s614, 128, 128, 8
        $region76: #{tpu_custom_call.1} parent=47 // pred_fallthru
          _
      $region48: #{tpu_custom_call.1} parent=5 // pred_fallthru
        _
      %p659 = scmp.le.s32.totalorder 2, %s27
      // Predicated region
      $region77: #{tpu_custom_call.1} parent=5 // pred_check
        %p660 = pneg %p659
      $region78: #{tpu_custom_call.1} parent=5 // pred_check_branch
        %662 = sbr.rel (%p660) target = $region80
      $region79: #{tpu_custom_call.1} parent=5 // pred_region
        %s663 = ssub.s32 %s27, 2
        // Predicated region
        $region81: #{tpu_custom_call.1} parent=79 // pred_check
          %p664 = pneg %p224
        $region82: #{tpu_custom_call.1} parent=79 // pred_check_branch
          %666 = sbr.rel (%p664) target = $region84
        $region83: #{tpu_custom_call.1} parent=79 // pred_region
          %s667 = sand.u32 %s209, 1
          %s668 = scalar_lea.sflag [#allocation4], %s667
          %s669 = sand.u32 %s209, 1
          %s670 = smul.addr %s669, 16
          %s671 = scalar_lea.vmem [#allocation10], %s670
          %673 = dma.done %s668, 256
        $region84: #{tpu_custom_call.1} parent=79 // pred_fallthru
          _
        // Predicated region
        $region85: #{tpu_custom_call.1} parent=79 // pred_check
          %p674 = pneg %p252
        $region86: #{tpu_custom_call.1} parent=79 // pred_check_branch
          %676 = sbr.rel (%p674) target = $region88
        $region87: #{tpu_custom_call.1} parent=79 // pred_region
          %p677 = scmp.lt.s32.totalorder %s38, 1
          %s678 = scalar_select %p677, %s38, 1
          %p679 = scmp.lt.s32.totalorder %s39, 0
          %s680 = scalar_select %p679, %s39, 0
          %s681 = smul.addr %s678, 4
          %s682 = sadd.s32 %s680, %s681
          %s683 = smul.addr %s682, 8
          %s684 = scalar_lea.vmem %s8, %s683
        $region88: #{tpu_custom_call.1} parent=79 // pred_fallthru
          _
        // Predicated region
        $region89: #{tpu_custom_call.1} parent=79 // pred_check
          %p685 = pneg %p280
        $region90: #{tpu_custom_call.1} parent=79 // pred_check_branch
          %687 = sbr.rel (%p685) target = $region92
        $region91: #{tpu_custom_call.1} parent=79 // pred_region
          %s688 = sand.u32 %s265, 1
          %s689 = scalar_lea.sflag [#allocation12], %s688
          %s690 = sand.u32 %s265, 1
          %s691 = smul.addr %s690, 16
          %s692 = scalar_lea.vmem [#allocation11], %s691
          %694 = dma.done %s689, 256
        $region92: #{tpu_custom_call.1} parent=79 // pred_fallthru
          _
      $region80: #{tpu_custom_call.1} parent=5 // pred_fallthru
        _
    $region6: #{tpu_custom_call.1} parent=1 // loop_footer
      %s31 = sadd.s32 1, %s27
    $region7: #{tpu_custom_call.1} parent=1 // loop_footer_branch
      %26 = sbr.rel target = $region3
    $region8: #{tpu_custom_call.1} parent=1 // loop_exit
      _
    %695 = vsyncpa [#allocation3], 1
    %s696 = scalar_lea.sflag [#allocation3], 1
    %697 = vsyncpa %s696, 1
    %698 = vsyncpa [#allocation6], 1
    %699 = vsyncpa [#allocation9], 1
    %700 = vsyncpa [#allocation4], 1
    %s701 = scalar_lea.sflag [#allocation4], 1
    %702 = vsyncpa %s701, 1
    %703 = vsyncpa [#allocation12], 1
    %s704 = scalar_lea.sflag [#allocation12], 1
    %705 = vsyncpa %s704, 1

</llo_original>
